<compile_context>
chip_gen: v7x
topology: tpu7x:2x2x1
jax: 0.10.0
libtpu: 0.0.40
codegen_flags: <defaults>
</compile_context>

<pallas_src>
import functools
import math

import jax
import jax.numpy as jnp
from jax.experimental import pallas as pl
from jax.experimental.pallas import tpu as pltpu


_ACT_DTYPE = jnp.bfloat16


# --------------------------- tiling / VMEM helpers ---------------------------

def _tile(dim, target, granule):
    """Largest `granule`-multiple divisor of `dim` that is <= target.

    Falls back to the full dimension (always layout-legal) when no such
    divisor exists or when dim <= target.
    """
    if dim <= target:
        return dim
    t = (target // granule) * granule
    while t >= granule:
        if dim % t == 0:
            return t
        t -= granule
    return dim


def _row_tile(n, target):
    """Row tile that keeps >=2 row blocks when possible so v7x's 2 TensorCores
    both get work on the 'parallel' axis (no-op on 1-TC v5e/v6e)."""
    return _tile(n, max(8, min(target, n // 2)), 8)


@functools.lru_cache(maxsize=None)
def _vmem_limit_bytes():
    """Generation-aware scoped-VMEM budget (3/4 of physical capacity)."""
    cap = None
    try:
        info = pltpu.get_tpu_info()
        cap = getattr(info, "vmem_capacity_bytes", None)
    except Exception:
        cap = None
    if not cap:
        cap = 64 * 1024 * 1024          # v7x-safe fallback
    return int(min(cap * 3 // 4, 112 * 1024 * 1024))


def _maybe_buffered_spec(block_shape, index_map, depth):
    """BlockSpec with optional deeper pipelining (only used on big-VMEM chips
    and long K reductions); guarded so JAX versions without pipeline_mode
    still work."""
    if depth is not None and hasattr(pl, "Buffered"):
        try:
            return pl.BlockSpec(block_shape, index_map,
                                pipeline_mode=pl.Buffered(depth))
        except TypeError:
            pass
    return pl.BlockSpec(block_shape, index_map)


# ----------------------------- LayerNorm -----------------------------------

def _layernorm_kernel(x_ref, g_ref, b_ref, o_ref, *, eps):
    x = x_ref[...].astype(jnp.float32)
    mean = jnp.mean(x, axis=-1, keepdims=True)
    var = jnp.mean(jnp.square(x - mean), axis=-1, keepdims=True)
    y = (x - mean) * jax.lax.rsqrt(var + eps)
    o_ref[...] = (y * g_ref[...].astype(jnp.float32)
                  + b_ref[...].astype(jnp.float32)).astype(o_ref.dtype)


def layernorm(x, gamma, beta, eps, *, tm_target=512):
    N, H = x.shape
    tm = _row_tile(N, tm_target)
    return pl.pallas_call(
        functools.partial(_layernorm_kernel, eps=eps),
        out_shape=jax.ShapeDtypeStruct((N, H), x.dtype),
        grid=(N // tm,),
        in_specs=[
            pl.BlockSpec((tm, H), lambda i: (i, 0)),
            pl.BlockSpec((1, H), lambda i: (0, 0)),
            pl.BlockSpec((1, H), lambda i: (0, 0)),
        ],
        out_specs=pl.BlockSpec((tm, H), lambda i: (i, 0)),
        compiler_params=pltpu.CompilerParams(
            dimension_semantics=("parallel",),
            vmem_limit_bytes=_vmem_limit_bytes()),
    )(x, gamma.reshape(1, H), beta.reshape(1, H))


# --------------------------- Tiled linear (GEMM) ----------------------------

def _linear_kernel(x_ref, w_ref, o_ref, acc_ref):
    @pl.when(pl.program_id(2) == 0)
    def _():
        acc_ref[...] = jnp.zeros_like(acc_ref)

    acc_ref[...] += jnp.dot(x_ref[...], w_ref[...],
                            preferred_element_type=jnp.float32)

    @pl.when(pl.program_id(2) == pl.num_programs(2) - 1)
    def _():
        o_ref[...] = acc_ref[...].astype(o_ref.dtype)


def _linear_bias_kernel(x_ref, w_ref, b_ref, o_ref, acc_ref):
    @pl.when(pl.program_id(2) == 0)
    def _():
        acc_ref[...] = jnp.zeros_like(acc_ref)

    acc_ref[...] += jnp.dot(x_ref[...], w_ref[...],
                            preferred_element_type=jnp.float32)

    @pl.when(pl.program_id(2) == pl.num_programs(2) - 1)
    def _():
        o_ref[...] = (acc_ref[...]
                      + b_ref[...].astype(jnp.float32)).astype(o_ref.dtype)


def linear(x, w, b=None, *, out_dtype=None,
           tm_target=512, tn_target=512, tk_target=1024):
    """x: (N, K) bf16; w: (K, O) bf16 (transposed vs torch nn.Linear.weight)."""
    N, K = x.shape
    O = w.shape[1]
    out_dtype = out_dtype or x.dtype
    tm = _row_tile(N, tm_target)
    tn = _tile(O, tn_target, 128)
    tk = _tile(K, tk_target, 128)
    n_k = K // tk
    grid = (N // tm, O // tn, n_k)
    # 3-deep weight pipeline only on 128-MiB-VMEM chips with long K reductions.
    deep = 3 if (n_k >= 4 and _vmem_limit_bytes() >= 96 * 1024 * 1024) else None

    in_specs = [
        pl.BlockSpec((tm, tk), lambda i, j, k: (i, k)),
        _maybe_buffered_spec((tk, tn), lambda i, j, k: (k, j), deep),
    ]
    args = [x, w]
    kernel = _linear_kernel
    if b is not None:  # bias-less heads skip the (N, O) add entirely
        in_specs.append(pl.BlockSpec((1, tn), lambda i, j, k: (0, j)))
        args.append(b.reshape(1, O))
        kernel = _linear_bias_kernel

    return pl.pallas_call(
        kernel,
        out_shape=jax.ShapeDtypeStruct((N, O), out_dtype),
        grid=grid,
        in_specs=in_specs,
        out_specs=pl.BlockSpec((tm, tn), lambda i, j, k: (i, j)),
        scratch_shapes=[pltpu.VMEM((tm, tn), jnp.float32)],
        compiler_params=pltpu.CompilerParams(
            dimension_semantics=("parallel", "parallel", "arbitrary"),
            vmem_limit_bytes=_vmem_limit_bytes()),
    )(*args)


def fused_heads(x, w, *, out_dtype=jnp.float32,
                tm_target=512, tn_target=1024, tk_target=1024):
    """Fused lm_head + multi-token heads: x (N, K) @ w (n_heads, K, V).

    Output is (n_heads, N, V) with per-head output blocks, so no post-hoc
    reshape/slice HBM passes over vocab-sized tensors are needed.
    (out_dtype=bfloat16 would halve the writeback bandwidth if acceptable.)
    """
    N, K = x.shape
    n_heads, _, V = w.shape
    tm = _row_tile(N, tm_target)
    tn = _tile(V, tn_target, 128)
    tk = _tile(K, tk_target, 128)
    bph = V // tn                         # output blocks per head
    n_k = K // tk
    deep = 3 if (n_k >= 4 and _vmem_limit_bytes() >= 96 * 1024 * 1024) else None
    grid = (N // tm, n_heads * bph, n_k)

    return pl.pallas_call(
        _linear_kernel,
        out_shape=jax.ShapeDtypeStruct((n_heads, N, V), out_dtype),
        grid=grid,
        in_specs=[
            pl.BlockSpec((tm, tk), lambda i, j, k: (i, k)),
            _maybe_buffered_spec((None, tk, tn),
                                 lambda i, j, k: (j // bph, k, j % bph), deep),
        ],
        out_specs=pl.BlockSpec((None, tm, tn),
                               lambda i, j, k: (j // bph, i, j % bph)),
        scratch_shapes=[pltpu.VMEM((tm, tn), jnp.float32)],
        compiler_params=pltpu.CompilerParams(
            dimension_semantics=("parallel", "parallel", "arbitrary"),
            vmem_limit_bytes=_vmem_limit_bytes()),
    )(x, w)


# ------------------------------ Attention -----------------------------------

def _attn_kernel(qkv_ref, o_ref, *, num_heads, head_dim, scale):
    """One batch element per step: all heads processed from the fused QKV block."""
    qkv = qkv_ref[...]                     # (S, 3H) bf16
    S = qkv.shape[0]
    H = num_heads * head_dim
    row = jax.lax.broadcasted_iota(jnp.int32, (S, S), 0)
    col = jax.lax.broadcasted_iota(jnp.int32, (S, S), 1)
    causal = row >= col                    # hoisted out of the head loop

    outs = []
    for h in range(num_heads):             # static unroll; no per-head grid overhead
        q = qkv[:, h * head_dim:(h + 1) * head_dim]
        k = qkv[:, H + h * head_dim:H + (h + 1) * head_dim]
        v = qkv[:, 2 * H + h * head_dim:2 * H + (h + 1) * head_dim]
        s = jax.lax.dot_general(q, k, (((1,), (1,)), ((), ())),
                                preferred_element_type=jnp.float32)   # (S, S)
        s = s * jnp.float32(scale)          # scale on f32 scores (no bf16 pre-scale)
        s = jnp.where(causal, s, jnp.float32(-1e30))
        s = s - jnp.max(s, axis=-1, keepdims=True)
        p = jnp.exp(s)
        # EUP reciprocal instead of a VALU divide.
        p = p * pl.reciprocal(jnp.sum(p, axis=-1, keepdims=True), approx=True)
        o = jnp.dot(p.astype(v.dtype), v, preferred_element_type=jnp.float32)
        outs.append(o)
    # Single lane-dense store of the concatenated-head layout (matches the
    # out-projection's expected input layout -> no XLA transposes).
    o_ref[...] = jnp.concatenate(outs, axis=-1).astype(o_ref.dtype)


def causal_attention(qkv, batch_size, seq_len, num_heads):
    """qkv: (N, 3H) bf16 in (batch*seq, q|k|v concatenated-heads) layout.

    Returns (N, H) attention output, heads concatenated along the lane dim.
    TODO(synk): for long sequences tile KV flash-style (online softmax) and use
    lane-aligned per-head blocks when head_dim % 128 == 0; at these shapes a
    whole (S, 3H) block per batch element fits comfortably in VMEM.
    """
    N, three_h = qkv.shape
    H = three_h // 3
    head_dim = H // num_heads
    scale = 1.0 / math.sqrt(head_dim)
    return pl.pallas_call(
        functools.partial(_attn_kernel, num_heads=num_heads,
                          head_dim=head_dim, scale=scale),
        out_shape=jax.ShapeDtypeStruct((N, H), qkv.dtype),
        grid=(batch_size,),
        in_specs=[pl.BlockSpec((seq_len, three_h), lambda b: (b, 0))],
        out_specs=pl.BlockSpec((seq_len, H), lambda b: (b, 0)),
        compiler_params=pltpu.CompilerParams(
            dimension_semantics=("parallel",),
            vmem_limit_bytes=_vmem_limit_bytes()),
    )(qkv)


# ------------------------------- MoE FFN ------------------------------------

def _moe_kernel(flags_ref, wblk_ref, x_ref, g_ref, w1_ref, b1_ref, w2_ref,
                b2_ref, o_ref, acc_ref, *, num_experts):
    i = pl.program_id(0)          # token tile   (parallel)
    e = pl.program_id(1)          # expert       (reduction)
    f = pl.program_id(2)          # F tile       (reduction, last)

    @pl.when((e == 0) & (f == 0))
    def _():
        acc_ref[...] = jnp.zeros_like(acc_ref)

    # Skip all MXU/VPU work when no token in this tile routed to expert e
    # (the matching weight DMAs are skipped via the flag-gated index_maps).
    @pl.when(flags_ref[i * num_experts + e] > 0)
    def _():
        g_full = g_ref[...].astype(jnp.float32)              # (tm, E)
        lane = jax.lax.broadcasted_iota(jnp.int32, g_full.shape, 1)
        gate = jnp.sum(jnp.where(lane == e, g_full, 0.0),
                       axis=1, keepdims=True)                 # (tm, 1)
        x = x_ref[...]
        h = jnp.dot(x, w1_ref[...], preferred_element_type=jnp.float32)
        h = jax.nn.gelu(h + b1_ref[...].astype(jnp.float32))
        y = jnp.dot(h.astype(w2_ref.dtype), w2_ref[...],
                    preferred_element_type=jnp.float32)
        # b2 contributes exactly once per active expert (first F tile only).
        y = jnp.where(f == 0, y + b2_ref[...].astype(jnp.float32), y)
        acc_ref[...] += gate * y

    @pl.when((e == pl.num_programs(1) - 1) & (f == pl.num_programs(2) - 1))
    def _():
        o_ref[...] = acc_ref[...].astype(o_ref.dtype)


def moe_ffn(x, gates, w1, b1, w2, b2, *, tm_target=256):
    """x: (N, H) bf16; gates: (N, E) f32 dense combine weights (0 off-top-k)."""
    N, H = x.shape
    E, _, F = w1.shape
    tm = _row_tile(N, tm_target)
    n_tiles = N // tm

    # Generation-aware F tiling: keep the double-buffered w1/w2 f-tiles
    # (~8*H*tf bytes) to about a third of the scoped VMEM budget.
    vmem = _vmem_limit_bytes()
    tf_budget = (vmem // 3) // max(1, 8 * H)
    tf_target = max(128, min(2048, (tf_budget // 128) * 128))
    tf = _tile(F, tf_target, 128)
    n_f = F // tf

    # Per-(token-tile, expert) activity flags (1D -> no 2D SMEM padding blowup)
    # NOTE: relies on route_topk scattering exact zeros for unselected experts.
    flags2d = (gates.reshape(n_tiles, tm, E).max(axis=1) > 0)
    flags = flags2d.astype(jnp.int32).reshape(-1)                    # (n_tiles*E,)

    # For every grid step, the expert whose weights should sit in VMEM:
    # the expert itself when active, otherwise the last active expert, so the
    # weight index_map result is unchanged across inactive steps and Pallas
    # skips the w1/w2 DMA entirely.
    L = n_tiles * E
    e_ids = jnp.tile(jnp.arange(E, dtype=jnp.int32), n_tiles)
    pos = jnp.where(flags > 0, jnp.arange(L, dtype=jnp.int32), -1)
    last_pos = jax.lax.cummax(pos, axis=0)
    w_blk = jnp.take(e_ids, jnp.maximum(last_pos, 0)).astype(jnp.int32)

    def x_map(i, e, f, flags_sm, wblk_sm):
        return (i, 0)

    def g_map(i, e, f, flags_sm, wblk_sm):
        return (i, 0)

    def w1_map(i, e, f, flags_sm, wblk_sm):
        idx = i * E + e
        active = flags_sm[idx] > 0
        return (wblk_sm[idx], 0, jnp.where(active, f, n_f - 1))

    def w2_map(i, e, f, flags_sm, wblk_sm):
        idx = i * E + e
        active = flags_sm[idx] > 0
        return (wblk_sm[idx], jnp.where(active, f, n_f - 1), 0)

    def b1_map(i, e, f, flags_sm, wblk_sm):
        return (e, 0, f)

    def b2_map(i, e, f, flags_sm, wblk_sm):
        return (e, 0, 0)

    def o_map(i, e, f, flags_sm, wblk_sm):
        return (i, 0)

    grid_spec = pltpu.PrefetchScalarGridSpec(
        num_scalar_prefetch=2,
        grid=(n_tiles, E, n_f),
        in_specs=[
            pl.BlockSpec((tm, H), x_map),
            pl.BlockSpec((tm, E), g_map),          # lane-dense gate block
            pl.BlockSpec((None, H, tf), w1_map),
            pl.BlockSpec((None, 1, tf), b1_map),
            pl.BlockSpec((None, tf, H), w2_map),
            pl.BlockSpec((None, 1, H), b2_map),
        ],
        out_specs=pl.BlockSpec((tm, H), o_map),
        scratch_shapes=[pltpu.VMEM((tm, H), jnp.float32)],
    )
    return pl.pallas_call(
        functools.partial(_moe_kernel, num_experts=E),
        out_shape=jax.ShapeDtypeStruct((N, H), x.dtype),
        grid_spec=grid_spec,
        compiler_params=pltpu.CompilerParams(
            dimension_semantics=("parallel", "arbitrary", "arbitrary"),
            vmem_limit_bytes=_vmem_limit_bytes()),
    )(flags, w_blk, x, gates.astype(jnp.float32), w1,
      b1.reshape(E, 1, F), w2, b2.reshape(E, 1, H))


# ------------------------------ Model (glue) --------------------------------

def route_topk(gate_logits, top_k, temperature, num_experts):
    """Top-k routing + load-balance aux loss (plain JAX; tiny)."""
    probs = jax.nn.softmax(gate_logits.astype(jnp.float32) / temperature,
                           axis=-1)                               # (N, E)
    topv, topi = jax.lax.top_k(probs, top_k)
    topv = topv / jnp.sum(topv, axis=-1, keepdims=True)
    dense = jnp.zeros_like(probs)
    dense = dense.at[jnp.arange(probs.shape[0])[:, None], topi].set(topv)
    mask = (dense > 0).astype(jnp.float32)
    frac = jnp.mean(mask, axis=0)
    mean_prob = jnp.mean(probs, axis=0)
    aux = num_experts * jnp.sum(frac * mean_prob)
    return dense, aux


def block_forward(p, x, B, S, cfg, gate_temperature):
    nh = cfg["num_heads"]
    eps = cfg["layer_norm_eps"]

    ln1 = layernorm(x, p["ln1_g"], p["ln1_b"], eps)
    # Fused Q|K|V projection: one GEMM, one read of ln1 from HBM.
    qkv = linear(ln1, p["wqkv"], p["bqkv"])                       # (N, 3H)
    # Attention works directly on the (N, 3H) layout and emits (N, H) in the
    # concatenated-head layout the out-projection expects: no XLA transposes.
    attn = causal_attention(qkv, B, S, nh)                        # (N, H)
    h = x + linear(attn, p["wo"], p["bo"])

    ln2 = layernorm(h, p["ln2_g"], p["ln2_b"], eps)
    gate_logits = linear(ln2, p["wg"], p["bg"], out_dtype=jnp.float32)
    gates, aux = route_topk(gate_logits, cfg["top_k"], gate_temperature,
                            cfg["num_experts"])
    moe_out = moe_ffn(ln2, gates, p["w1"], p["b1"], p["w2"], p["b2"])
    return h + moe_out, aux


def forward(params, input_ids, cfg, gate_temperature=1.0):
    B, S = input_ids.shape
    H = cfg["hidden_size"]
    V = cfg["vocab_size"]

    position_ids = jnp.broadcast_to(jnp.arange(S)[None, :], (B, S))
    x = params["embed_tokens"][input_ids] + params["embed_positions"][position_ids]
    # dropout: identity (inference)
    x = x.astype(_ACT_DTYPE).reshape(B * S, H)

    total_aux = jnp.float32(0.0)
    for layer_params in params["layers"]:
        x, aux = block_forward(layer_params, x, B, S, cfg, gate_temperature)
        total_aux = total_aux + aux

    x = layernorm(x, params["norm_g"], params["norm_b"], cfg["layer_norm_eps"])

    # Fused lm_head + multi-token prediction heads: one stacked GEMM sharing a
    # single read of x; per-head output blocks avoid reshape/slice HBM passes.
    n_heads = params["heads_w"].shape[0]
    all_logits = fused_heads(x, params["heads_w"])                # (n_heads, N, V)
    logits = all_logits[0].reshape(B, S, V)
    multi_token_logits = [all_logits[1 + i].reshape(B, S, V)
                          for i in range(n_heads - 1)]
    return logits, multi_token_logits, total_aux


def init_params(key, cfg):
    H = cfg["hidden_size"]
    V = cfg["vocab_size"]
    P = cfg["max_position_embeddings"]
    E = cfg["num_experts"]
    F = cfg["expert_hidden_size"]
    L = cfg["num_layers"]
    MTP = cfg["multi_token_prediction"]

    keys = iter(jax.random.split(key, 256))

    def nrm(shape):
        # bf16 weights: full-rate MXU, half the weight HBM/VMEM traffic.
        return (0.02 * jax.random.normal(next(keys), shape, jnp.float32)
                ).astype(_ACT_DTYPE)

    # lm_head followed by the multi-token prediction heads, stacked along a
    # leading dim for a single fused GEMM with per-head output blocks.
    n_heads = 1 + (MTP if MTP > 1 else 0)
    heads_w = jnp.stack([nrm((H, V)) for _ in range(n_heads)], axis=0)

    params = {
        "embed_tokens": nrm((V, H)),
        "embed_positions": nrm((P, H)),
        "norm_g": jnp.ones((H,), jnp.float32),
        "norm_b": jnp.zeros((H,), jnp.float32),
        "heads_w": heads_w,
        "layers": [],
    }
    for _ in range(L):
        wqkv = jnp.concatenate([nrm((H, H)) for _ in range(3)], axis=1)
        params["layers"].append({
            "ln1_g": jnp.ones((H,), jnp.float32), "ln1_b": jnp.zeros((H,), jnp.float32),
            "ln2_g": jnp.ones((H,), jnp.float32), "ln2_b": jnp.zeros((H,), jnp.float32),
            "wqkv": wqkv, "bqkv": jnp.zeros((3 * H,), jnp.float32),
            "wo": nrm((H, H)), "bo": jnp.zeros((H,), jnp.float32),
            "wg": nrm((H, E)), "bg": jnp.zeros((E,), jnp.float32),
            "w1": nrm((E, H, F)), "b1": jnp.zeros((E, F), jnp.float32),
            "w2": nrm((E, F, H)), "b2": jnp.zeros((E, H), jnp.float32),
        })
    return params


if __name__ == "__main__":
    cfg = {
        "vocab_size": 64,
        "hidden_size": 32,
        "num_layers": 2,
        "max_position_embeddings": 16,
        "layer_norm_eps": 1e-5,
        "num_heads": 4,
        "num_experts": 4,
        "top_k": 2,
        "expert_hidden_size": 64,
        "multi_token_prediction": 2,
    }

    key = jax.random.PRNGKey(0)
    pkey, dkey = jax.random.split(key)
    params = init_params(pkey, cfg)

    B, S = 2, 8
    input_ids = jax.random.randint(dkey, (B, S), 0, cfg["vocab_size"],
                                   dtype=jnp.int32)

    logits, multi_token_logits, load_balance_loss = forward(
        params, input_ids, cfg, gate_temperature=1.0)

    jax.block_until_ready(logits)
    for m in multi_token_logits:
        jax.block_until_ready(m)
    jax.block_until_ready(load_balance_loss)

    assert logits.shape == (B, S, cfg["vocab_size"])
    assert len(multi_token_logits) == cfg["multi_token_prediction"]
    print("KERNEL_OK")
</pallas_src>

<mosaic_0001>
module attributes {stable_mosaic.version = 11 : i64} {
  func.func @_layernorm_kernel(%arg0: i32, %arg1: memref<8x32xbf16, #tpu.memory_space<vmem>>, %arg2: memref<1x32xf32, #tpu.memory_space<vmem>>, %arg3: memref<1x32xf32, #tpu.memory_space<vmem>>, %arg4: memref<8x32xbf16, #tpu.memory_space<vmem>>) attributes {dimension_semantics = [#tpu.dimension_semantics<parallel>], iteration_bounds = array<i64: 2>, scalar_prefetch = 0 : i64, scratch_operands = 0 : i64, tpu.core_type = #tpu.core_type<tc>, window_params = [{transform_indices = @transform_0, window_bounds = array<i64: 8, 32>}, {pipeline_mode = #tpu.pipeline_mode<synchronous>, transform_indices = @transform_1, window_bounds = array<i64: 1, 32>}, {pipeline_mode = #tpu.pipeline_mode<synchronous>, transform_indices = @transform_2, window_bounds = array<i64: 1, 32>}, {transform_indices = @transform_3, window_bounds = array<i64: 8, 32>}]} {
    %c0 = arith.constant 0 : index
    %c0_0 = arith.constant 0 : index
    %0 = vector.load %arg1[%c0, %c0_0] : memref<8x32xbf16, #tpu.memory_space<vmem>>, vector<8x32xbf16>
    %1 = arith.extf %0 : vector<8x32xbf16> to vector<8x32xf32>
    %cst = arith.constant dense<0.000000e+00> : vector<8xf32>
    %2 = vector.multi_reduction <add>, %1, %cst [1] : vector<8x32xf32> to vector<8xf32>
    %3 = vector.shape_cast %2 : vector<8xf32> to vector<8x1xf32>
    %cst_1 = arith.constant 3.200000e+01 : f32
    %4 = vector.broadcast %cst_1 : f32 to vector<8x1xf32>
    %5 = arith.divf %3, %4 : vector<8x1xf32>
    %6 = vector.broadcast %5 : vector<8x1xf32> to vector<8x32xf32>
    %7 = arith.subf %1, %6 : vector<8x32xf32>
    %8 = arith.mulf %7, %7 : vector<8x32xf32>
    %cst_2 = arith.constant dense<0.000000e+00> : vector<8xf32>
    %9 = vector.multi_reduction <add>, %8, %cst_2 [1] : vector<8x32xf32> to vector<8xf32>
    %10 = vector.shape_cast %9 : vector<8xf32> to vector<8x1xf32>
    %cst_3 = arith.constant 3.200000e+01 : f32
    %11 = vector.broadcast %cst_3 : f32 to vector<8x1xf32>
    %12 = arith.divf %10, %11 : vector<8x1xf32>
    %13 = vector.broadcast %5 : vector<8x1xf32> to vector<8x32xf32>
    %14 = arith.subf %1, %13 : vector<8x32xf32>
    %cst_4 = arith.constant 9.99999974E-6 : f32
    %15 = vector.broadcast %cst_4 : f32 to vector<8x1xf32>
    %16 = arith.addf %12, %15 : vector<8x1xf32>
    %17 = math.rsqrt %16 : vector<8x1xf32>
    %18 = vector.broadcast %17 : vector<8x1xf32> to vector<8x32xf32>
    %19 = arith.mulf %14, %18 : vector<8x32xf32>
    %c0_5 = arith.constant 0 : index
    %c0_6 = arith.constant 0 : index
    %20 = vector.load %arg2[%c0_5, %c0_6] : memref<1x32xf32, #tpu.memory_space<vmem>>, vector<1x32xf32>
    %21 = vector.broadcast %20 : vector<1x32xf32> to vector<8x32xf32>
    %22 = arith.mulf %19, %21 : vector<8x32xf32>
    %c0_7 = arith.constant 0 : index
    %c0_8 = arith.constant 0 : index
    %23 = vector.load %arg3[%c0_7, %c0_8] : memref<1x32xf32, #tpu.memory_space<vmem>>, vector<1x32xf32>
    %24 = vector.broadcast %23 : vector<1x32xf32> to vector<8x32xf32>
    %25 = arith.addf %22, %24 : vector<8x32xf32>
    %26 = arith.truncf %25 : vector<8x32xf32> to vector<8x32xbf16>
    %c0_9 = arith.constant 0 : index
    %c0_10 = arith.constant 0 : index
    %27 = vector.load %arg4[%c0_9, %c0_10] : memref<8x32xbf16, #tpu.memory_space<vmem>>, vector<8x32xbf16>
    tpu.vector_store %arg4[%c0_9, %c0_10], %26 {strides = array<i32>} : memref<8x32xbf16, #tpu.memory_space<vmem>>, vector<8x32xbf16>,
    return
  }
  func.func @transform_0(%arg0: i32) -> (i32, i32) {
    %c0_i32 = arith.constant 0 : i32
    %c0_i32_0 = arith.constant 0 : i32
    return %arg0, %c0_i32 : i32, i32
  }
  func.func @transform_1(%arg0: i32) -> (i32, i32) {
    %c0_i32 = arith.constant 0 : i32
    %c0_i32_0 = arith.constant 0 : i32
    %c0_i32_1 = arith.constant 0 : i32
    return %c0_i32, %c0_i32_0 : i32, i32
  }
  func.func @transform_2(%arg0: i32) -> (i32, i32) {
    %c0_i32 = arith.constant 0 : i32
    %c0_i32_0 = arith.constant 0 : i32
    %c0_i32_1 = arith.constant 0 : i32
    return %c0_i32, %c0_i32_0 : i32, i32
  }
  func.func @transform_3(%arg0: i32) -> (i32, i32) {
    %c0_i32 = arith.constant 0 : i32
    %c0_i32_0 = arith.constant 0 : i32
    return %arg0, %c0_i32 : i32, i32
  }
}

</mosaic_0001>

<llo_original>
// kernel: tpu_custom_call.1
$region0: #{tpu_custom_call.1}
  #allocation0 [shape = 'u32[]', space=smem, size = 0x4, offset = 0x4, fixed_abs, tag = 'smem constant byte address 0x4 - core index']
  #allocation1 [shape = 'u32[144,128]{1,0:T(1,128)}', space=vmem, size = 0x12000, scoped, tag = 'internal scratch']
  %s0 = inlined_call_operand.hbm [shape: bf16[16,32], index: 0, kind: input, shape index: {}]
  %s1 = inlined_call_operand.vmem [shape: f32[1,32], index: 1, kind: input, shape index: {}]
  %s2 = inlined_call_operand.vmem [shape: f32[1,32], index: 2, kind: input, shape index: {}]
  %s3 = inlined_call_operand.hbm [shape: bf16[16,32], index: 3, kind: output, shape index: {}]
  %s4 = sld [smem:[#allocation0]]
  $region49: #{tpu_custom_call.1} parent=0
    _
  %s6 = ssub.s32 1, %s4
  %s7 = scalar_select 0, %s6, %s4
  $region1: #{tpu_custom_call.1} parent=0
    #allocation2 [shape = 'u8[4096]{0}', space=vmem, size = 0x1000, scoped, tag = 'input window, operand 0']
    #allocation3 [shape = 's32[2]{0}', space=sflag, size = 0x8, scoped, tag = 'scoped memory for tpu_custom_call.1']
    #allocation4 [shape = 's32[2]{0}', space=sflag, size = 0x8, scoped, tag = 'scoped memory for tpu_custom_call.1']
    #allocation5 [shape = 'u8[4096]{0}', space=vmem, size = 0x1000, scoped, tag = 'output window, operand 0']
    %8 = vsyncpa [#allocation3], 0
    %s9 = scalar_lea.sflag [#allocation3], 1
    %10 = vsyncpa %s9, 0
    %11 = vsyncpa [#allocation4], 0
    %s12 = scalar_lea.sflag [#allocation4], 1
    %13 = vsyncpa %s12, 0
    loop: start=0, step=1, limit=4
    $region2: #{tpu_custom_call.1} parent=1 // loop_pre_header
      _
    $region3: #{tpu_custom_call.1} parent=1 // loop_header
      %s15 = sphi 0, %s19
      %p16 = scmp.ge.s32.totalorder %s15, 4
      %s25 = sphi 0, %s27
      %s28 = sphi 0, %s25
      %s29 = sphi 0, %s28
      %s45 = sphi 0, %s29
      %s49 = sphi 0, %s49
      %s51 = sphi 0, %s49
      %s52 = sphi 0, %s51
      %s66 = sphi 0, %s52
      %s70 = sphi 0, %s70
      %s72 = sphi 0, %s70
      %s73 = sphi 0, %s72
      %s87 = sphi 0, %s73
      %s93 = sphi 0, %s95
      %s96 = sphi 0, %s93
      %s97 = sphi 0, %s96
      %s113 = sphi 0, %s97
    $region4: #{tpu_custom_call.1} parent=1 // loop_header_branch
      %18 = sbr.rel (%p16) target = $region8
    $region5: #{tpu_custom_call.1} parent=1 // loop_body
      %s20 = ssub.s32 %s15, 1
      %s21 = ssub.s32 %s15, 2
      %s22 = sadd.s32 %s15, 1
      %s23 = ssub.s32 %s15, %s22
      %p24 = scmp.eq.s32.totalorder %s23, 0
      %s26 = sadd.s32 %s25, 1
      %s27 = scalar_select %p24, %s25, %s26
      %p30 = pneg %p24
      %p31 = scmp.eq.s32.totalorder %s15, 1
      %p32 = por %p30, %p31
      %p33 = scmp.ne.s32.totalorder %s25, %s28
      %p34 = scmp.eq.s32.totalorder %s15, 0
      %p35 = por %p33, %p34
      %p36 = scmp.ne.s32.totalorder %s25, %s28
      %p37 = scmp.eq.s32.totalorder %s20, 1
      %p38 = por %p36, %p37
      %p39 = scmp.ne.s32.totalorder %s28, %s29
      %p40 = scmp.eq.s32.totalorder %s20, 0
      %p41 = por %p39, %p40
      %p42 = scmp.ne.s32.totalorder %s28, %s29
      %p43 = scmp.eq.s32.totalorder %s21, 1
      %p44 = por %p42, %p43
      %p46 = scmp.ne.s32.totalorder %s29, %s45
      %p47 = scmp.eq.s32.totalorder %s21, 0
      %p48 = por %p46, %p47
      %s50 = sadd.s32 %s49, 1
      %p53 = scmp.eq.s32.totalorder %s15, 1
      %p54 = scmp.ne.s32.totalorder %s49, %s51
      %p55 = scmp.eq.s32.totalorder %s15, 0
      %p56 = por %p54, %p55
      %p57 = scmp.ne.s32.totalorder %s49, %s51
      %p58 = scmp.eq.s32.totalorder %s20, 1
      %p59 = por %p57, %p58
      %p60 = scmp.ne.s32.totalorder %s51, %s52
      %p61 = scmp.eq.s32.totalorder %s20, 0
      %p62 = por %p60, %p61
      %p63 = scmp.ne.s32.totalorder %s51, %s52
      %p64 = scmp.eq.s32.totalorder %s21, 1
      %p65 = por %p63, %p64
      %p67 = scmp.ne.s32.totalorder %s52, %s66
      %p68 = scmp.eq.s32.totalorder %s21, 0
      %p69 = por %p67, %p68
      %s71 = sadd.s32 %s70, 1
      %p74 = scmp.eq.s32.totalorder %s15, 1
      %p75 = scmp.ne.s32.totalorder %s70, %s72
      %p76 = scmp.eq.s32.totalorder %s15, 0
      %p77 = por %p75, %p76
      %p78 = scmp.ne.s32.totalorder %s70, %s72
      %p79 = scmp.eq.s32.totalorder %s20, 1
      %p80 = por %p78, %p79
      %p81 = scmp.ne.s32.totalorder %s72, %s73
      %p82 = scmp.eq.s32.totalorder %s20, 0
      %p83 = por %p81, %p82
      %p84 = scmp.ne.s32.totalorder %s72, %s73
      %p85 = scmp.eq.s32.totalorder %s21, 1
      %p86 = por %p84, %p85
      %p88 = scmp.ne.s32.totalorder %s73, %s87
      %p89 = scmp.eq.s32.totalorder %s21, 0
      %p90 = por %p88, %p89
      %s91 = ssub.s32 %s15, %s22
      %p92 = scmp.eq.s32.totalorder %s91, 0
      %s94 = sadd.s32 %s93, 1
      %s95 = scalar_select %p92, %s93, %s94
      %p98 = pneg %p92
      %p99 = scmp.eq.s32.totalorder %s15, 1
      %p100 = por %p98, %p99
      %p101 = scmp.ne.s32.totalorder %s93, %s96
      %p102 = scmp.eq.s32.totalorder %s15, 0
      %p103 = por %p101, %p102
      %p104 = scmp.ne.s32.totalorder %s93, %s96
      %p105 = scmp.eq.s32.totalorder %s20, 1
      %p106 = por %p104, %p105
      %p107 = scmp.ne.s32.totalorder %s96, %s97
      %p108 = scmp.eq.s32.totalorder %s20, 0
      %p109 = por %p107, %p108
      %p110 = scmp.ne.s32.totalorder %s96, %s97
      %p111 = scmp.eq.s32.totalorder %s21, 1
      %p112 = por %p110, %p111
      %p114 = scmp.ne.s32.totalorder %s97, %s113
      %p115 = scmp.eq.s32.totalorder %s21, 0
      %p116 = por %p114, %p115
      %p117 = scmp.le.s32.totalorder 1, %s15
      %p118 = scmp.lt.s32.totalorder %s15, 3
      %p119 = pnand %p117, %p118
      %p120 = pneg %p119
      // Predicated region
      $region9: #{tpu_custom_call.1} parent=5 // pred_check
        _
      $region10: #{tpu_custom_call.1} parent=5 // pred_check_branch
        %122 = sbr.rel (%p119) target = $region12
      $region11: #{tpu_custom_call.1} parent=5 // pred_region
        %s123 = ssub.s32 %s15, 1
        // Predicated region
        $region13: #{tpu_custom_call.1} parent=11 // pred_check
          %p124 = pneg %p62
        $region14: #{tpu_custom_call.1} parent=11 // pred_check_branch
          %126 = sbr.rel (%p124) target = $region16
        $region15: #{tpu_custom_call.1} parent=11 // pred_region
          _
        $region16: #{tpu_custom_call.1} parent=11 // pred_fallthru
          _
        // Predicated region
        $region17: #{tpu_custom_call.1} parent=11 // pred_check
          %p127 = pneg %p83
        $region18: #{tpu_custom_call.1} parent=11 // pred_check_branch
          %129 = sbr.rel (%p127) target = $region20
        $region19: #{tpu_custom_call.1} parent=11 // pred_region
          _
        $region20: #{tpu_custom_call.1} parent=11 // pred_fallthru
          _
      $region12: #{tpu_custom_call.1} parent=5 // pred_fallthru
        _
      %p130 = scmp.lt.s32.totalorder %s15, 2
      // Predicated region
      $region21: #{tpu_custom_call.1} parent=5 // pred_check
        %p131 = pneg %p130
      $region22: #{tpu_custom_call.1} parent=5 // pred_check_branch
        %133 = sbr.rel (%p131) target = $region24
      $region23: #{tpu_custom_call.1} parent=5 // pred_region
        // Predicated region
        $region25: #{tpu_custom_call.1} parent=23 // pred_check
          %p134 = pneg %p35
        $region26: #{tpu_custom_call.1} parent=23 // pred_check_branch
          %136 = sbr.rel (%p134) target = $region28
        $region27: #{tpu_custom_call.1} parent=23 // pred_region
          %s137 = sand.u32 %s25, 1
          %s138 = scalar_lea.sflag [#allocation3], %s137
          %s139 = sand.u32 %s25, 1
          %s140 = smul.addr %s139, 4
          %s141 = scalar_lea.vmem [#allocation2], %s140
          %s143 = ssub.s32 64, 64
          %144 = vsyncadd %s138, %s143
          %s145 = smul.addr %s15, 64
          %s146 = scalar_lea.hbm %s0, %s145
          %s148 = sshll.u32 %s141, 4
          %s149 = int_to_ptr.vmem [resolvable:$true] %s148
          %151 = dma.hbm_to_vmem [thread:$0]  %s146, 64, %s149, %s138
        $region28: #{tpu_custom_call.1} parent=23 // pred_fallthru
          _
      $region24: #{tpu_custom_call.1} parent=5 // pred_fallthru
        _
      %p152 = scmp.le.s32.totalorder 1, %s15
      %p153 = scmp.lt.s32.totalorder %s15, 3
      %p154 = pnand %p152, %p153
      %p155 = pneg %p154
      // Predicated region
      $region29: #{tpu_custom_call.1} parent=5 // pred_check
        _
      $region30: #{tpu_custom_call.1} parent=5 // pred_check_branch
        %157 = sbr.rel (%p154) target = $region32
      $region31: #{tpu_custom_call.1} parent=5 // pred_region
        %s158 = ssub.s32 %s15, 1
        %s159 = sand.u32 %s28, 1
        %s160 = scalar_lea.sflag [#allocation3], %s159
        %s161 = sand.u32 %s28, 1
        %s162 = smul.addr %s161, 4
        %s163 = scalar_lea.vmem [#allocation2], %s162
        // Predicated region
        $region33: #{tpu_custom_call.1} parent=31 // pred_check
          %p164 = pneg %p41
        $region34: #{tpu_custom_call.1} parent=31 // pred_check_branch
          %166 = sbr.rel (%p164) target = $region36
        $region35: #{tpu_custom_call.1} parent=31 // pred_region
          %167 = dma.done %s160, 64
        $region36: #{tpu_custom_call.1} parent=31 // pred_fallthru
          _
        %s168 = sand.u32 %s28, 1
        %s169 = scalar_lea.sflag [#allocation3], %s168
        %s170 = sand.u32 %s28, 1
        %s171 = smul.addr %s170, 4
        %s172 = scalar_lea.vmem [#allocation2], %s171
        %p173 = pneg %p41
        %p174 = pneg %p38
        %p175 = pneg %p62
        %p176 = pneg %p59
        %p177 = pneg %p83
        %p178 = pneg %p80
        %p179 = pneg %p109
        %p180 = pneg %p106
        %s181 = sand.u32 %s96, 1
        %s182 = scalar_lea.sflag [#allocation4], %s181
        %s183 = sand.u32 %s96, 1
        %s184 = smul.addr %s183, 4
        %s185 = scalar_lea.vmem [#allocation5], %s184
        %v186 = vld [vmem:[%s163] sm:$0xf]
        %v187 = vunpack.c.l.bf16 %v186
        %vm188 = vcmask 261120
        %v189 = vsel %vm188, %v187, 0.0
        %190 = vadd.xlane.f32.xlu0 %v189
        %v191 = vpop.xlane.xlu0 %190
        %v192 = vrcp.pop 32.0
        %v193 = vmul.f32 %v191, %v192
        %v194 = vsub.f32 %v187, %v193
        %v195 = vmul.f32 %v194, %v194
        %v196 = vsel %vm188, %v195, 0.0
        %197 = vadd.xlane.f32.xlu0 %v196
        %v198 = vpop.xlane.xlu0 %197
        %v199 = vmul.f32 %v198, %v192
        %v200 = vadd.f32 %v199, 1e-05
        %v201 = vrsqrt.pop %v200
        %v202 = vmul.f32 %v194, %v201
        %v203 = vld [vmem:[%s1] sm:$0x1]
        %v205 = vlaneseq
        %v206 = vshrl.u32 %v205, 7
        %v207 = vsub.s32 0, %v206
        %v208 = vrot.slane %v203, %v207
        %v210 = vmul.f32 %v202, %v208
        %v211 = vld [vmem:[%s2] sm:$0x1]
        %v213 = vlaneseq
        %v214 = vshrl.u32 %v213, 7
        %v215 = vsub.s32 0, %v214
        %v216 = vrot.slane %v211, %v215
        %v218 = vadd.f32 %v210, %v216
        %v219 = vpack.c.bf16 %v218, %v218
        %vm220 = vcmask 257024
        %221 = vst.msk [vmem:[%s185] sm:$0xf] %vm220, %v219
        %s222 = sand.u32 %s96, 1
        %s223 = scalar_lea.sflag [#allocation4], %s222
        %s224 = sand.u32 %s96, 1
        %s225 = smul.addr %s224, 4
        %s226 = scalar_lea.vmem [#allocation5], %s225
        // Predicated region
        $region37: #{tpu_custom_call.1} parent=31 // pred_check
          %p227 = pneg %p106
        $region38: #{tpu_custom_call.1} parent=31 // pred_check_branch
          %229 = sbr.rel (%p227) target = $region40
        $region39: #{tpu_custom_call.1} parent=31 // pred_region
          %s231 = ssub.s32 64, 64
          %232 = vsyncadd %s223, %s231
          %s233 = smul.addr %s20, 64
          %s234 = scalar_lea.hbm %s3, %s233
          %s236 = sshll.u32 %s226, 4
          %s237 = int_to_ptr.vmem [resolvable:$true] %s236
          %239 = dma.vmem_to_hbm [thread:$0]  %s237, 64, %s234, %s223
        $region40: #{tpu_custom_call.1} parent=31 // pred_fallthru
          _
      $region32: #{tpu_custom_call.1} parent=5 // pred_fallthru
        _
      %p240 = scmp.le.s32.totalorder 2, %s15
      // Predicated region
      $region41: #{tpu_custom_call.1} parent=5 // pred_check
        %p241 = pneg %p240
      $region42: #{tpu_custom_call.1} parent=5 // pred_check_branch
        %243 = sbr.rel (%p241) target = $region44
      $region43: #{tpu_custom_call.1} parent=5 // pred_region
        %s244 = ssub.s32 %s15, 2
        // Predicated region
        $region45: #{tpu_custom_call.1} parent=43 // pred_check
          %p245 = pneg %p112
        $region46: #{tpu_custom_call.1} parent=43 // pred_check_branch
          %247 = sbr.rel (%p245) target = $region48
        $region47: #{tpu_custom_call.1} parent=43 // pred_region
          %s248 = sand.u32 %s97, 1
          %s249 = scalar_lea.sflag [#allocation4], %s248
          %s250 = sand.u32 %s97, 1
          %s251 = smul.addr %s250, 4
          %s252 = scalar_lea.vmem [#allocation5], %s251
          %253 = dma.done %s249, 64
        $region48: #{tpu_custom_call.1} parent=43 // pred_fallthru
          _
      $region44: #{tpu_custom_call.1} parent=5 // pred_fallthru
        _
    $region6: #{tpu_custom_call.1} parent=1 // loop_footer
      %s19 = sadd.s32 1, %s15
    $region7: #{tpu_custom_call.1} parent=1 // loop_footer_branch
      %14 = sbr.rel target = $region3
    $region8: #{tpu_custom_call.1} parent=1 // loop_exit
      _
    %254 = vsyncpa [#allocation3], 1
    %s255 = scalar_lea.sflag [#allocation3], 1
    %256 = vsyncpa %s255, 1
    %257 = vsyncpa [#allocation4], 1
    %s258 = scalar_lea.sflag [#allocation4], 1
    %259 = vsyncpa %s258, 1

</llo_original>
